<compile_context>
chip_gen: v7x
topology: tpu7x:2x2x1
jax: 0.10.0
libtpu: 0.0.40
codegen_flags: <defaults>
</compile_context>

<pallas_src>
import jax
import jax.numpy as jnp
from jax import lax
from jax.experimental import pallas as pl
from jax.experimental.pallas import tpu as pltpu

_PACK_W = 32                      # packed output lane width (19 real values + zero padding)
_VMEM_LIMIT = 48 * 1024 * 1024    # scoped VMEM requested from Mosaic (safe on v5e/v6e/v7x)
_VMEM_BUDGET = 40 * 1024 * 1024   # budget the batch tile is sized against


def _estimate_kernel(stk_ref, out_ref):
    """One block = Bt batch rows; N points live on the 128-lane axis.

    stk_ref: (5, Bt, N) = [src_x, src_y, dst_x, dst_y, weights]
    out_ref: (Bt, _PACK_W) packed Gram sums + normalization stats.
    """
    sx = stk_ref[0]
    sy = stk_ref[1]
    dx = stk_ref[2]
    dy = stk_ref[3]
    w = stk_ref[4]
    bt, n_pts = sx.shape
    inv_n = jnp.float32(1.0 / n_pts)

    def rsum(x):                                  # lane-axis (XLU) reduce -> (Bt, 1)
        return jnp.sum(x, axis=-1, keepdims=True)

    # --- centroids (unweighted) and centered coordinates ---
    cs_x = rsum(sx) * inv_n
    cs_y = rsum(sy) * inv_n
    cd_x = rsum(dx) * inv_n
    cd_y = rsum(dy) * inv_n
    ex = sx - cs_x
    ey = sy - cs_y
    fx = dx - cd_x
    fy = dy - cd_y

    # --- Hartley normalization factors (applied post-sum; rms == 0 -> NaN like the
    #     torch masked_fill path). ---
    ms_s = rsum(ex * ex + ey * ey) * inv_n        # mean squared radius, src
    ms_d = rsum(fx * fx + fy * fy) * inv_n        # mean squared radius, dst
    sqrt2 = jnp.float32(1.4142135623730951)
    nan = jnp.float32(jnp.nan)
    nf_s = jnp.where(ms_s == 0.0, nan, sqrt2 * lax.rsqrt(ms_s))
    nf_d = jnp.where(ms_d == 0.0, nan, sqrt2 * lax.rsqrt(ms_d))

    # --- relative weights u = w / max(w).  Approx reciprocal is safe: a uniform per-row
    #     scale of u scales the whole Gram matrix and cancels in the eigenvector. ---
    u = w * pl.reciprocal(jnp.max(w, axis=-1, keepdims=True), approx=True)

    # --- pre-weighted operands, reused by all Gram sums ---
    uex = u * ex
    uey = u * ey
    ufx = u * fx
    ufy = u * fy

    # 13 unique entries of G = (W A)^T (W A), on centered-but-unscaled coordinates.
    sxx = rsum(uex * ex)
    sxy = rsum(uex * ey)
    syy = rsum(uey * ey)
    s_x = rsum(uex)
    s_y = rsum(uey)
    s_1 = rsum(u)
    sxdx = rsum(uex * fx)
    sydx = rsum(uey * fx)
    s_dx = rsum(ufx)
    sxdy = rsum(uex * fy)
    sydy = rsum(uey * fy)
    s_dy = rsum(ufy)
    sdd = rsum(ufx * fx + ufy * fy)

    # Deferred normalization: apply nf powers on the (Bt,1) scalars (cheap VPU work).
    nss = nf_s * nf_s
    nsd = nf_s * nf_d
    ndd = nf_d * nf_d
    sxx = sxx * nss
    sxy = sxy * nss
    syy = syy * nss
    s_x = s_x * nf_s
    s_y = s_y * nf_s
    sxdx = sxdx * nsd
    sydx = sydx * nsd
    sxdy = sxdy * nsd
    sydy = sydy * nsd
    s_dx = s_dx * nf_d
    s_dy = s_dy * nf_d
    sdd = sdd * ndd

    pad = jnp.zeros((bt, _PACK_W - 19), jnp.float32)
    out_ref[...] = jnp.concatenate(
        [sxx, sxy, syy, s_x, s_y, s_1,
         sxdx, sydx, s_dx, sxdy, sydy, s_dy, sdd,
         cs_x, cs_y, nf_s, cd_x, cd_y, nf_d, pad], axis=-1)


def _pallas_estimate(stacked):
    """stacked: (5, B, N) f32 slab.  Returns packed sums/stats (B, _PACK_W)."""
    _, b, n = stacked.shape

    # Per-batch-row VMEM per step: double-buffered stacked input (2 x 5 planes) plus
    # roughly 12 live compiler-materialized (Bt, N) f32 intermediates.
    bytes_per_row = (2 * 5 + 12) * 4 * max(n, 1)
    bt = (_VMEM_BUDGET // bytes_per_row) // 8 * 8
    b_up = -(-b // 8) * 8
    bt = max(8, min(bt, 512, b_up))

    # v7x: ensure >= 2 grid steps when there is enough work, so both TensorCores get
    # batches via the "parallel" axis (neutral on single-TC v5e/v6e).
    if b_up >= 16 and pl.cdiv(b, bt) < 2:
        bt = max(8, -(-(bt // 2) // 8) * 8)

    grid = pl.cdiv(b, bt)
    b_pad = grid * bt
    if b_pad != b:
        # Single zero-pad of the already-stacked slab (ragged-batch case only); padded
        # rows produce NaN/garbage confined to rows that are discarded below.
        stacked = jnp.pad(stacked, ((0, 0), (0, b_pad - b), (0, 0)))

    packed = pl.pallas_call(
        _estimate_kernel,
        out_shape=jax.ShapeDtypeStruct((b_pad, _PACK_W), jnp.float32),
        grid_spec=pltpu.PrefetchScalarGridSpec(
            num_scalar_prefetch=0,
            grid=(grid,),
            in_specs=[pl.BlockSpec((5, bt, n), lambda i: (0, i, 0))],
            out_specs=pl.BlockSpec((bt, _PACK_W), lambda i: (i, 0)),
        ),
        compiler_params=pltpu.CompilerParams(
            dimension_semantics=("parallel",),
            vmem_limit_bytes=_VMEM_LIMIT),
    )(stacked)
    return packed[:b]


def affine_transform_2d(src, dst, weights=None):
    """JAX/Pallas equivalent of AffineTransform2D.forward (returns (B,1,3,3))."""
    if src.shape != dst.shape:
        return None
    if src.shape[1] < 2:
        return None
    # TODO(synk): limit_of_points random subsampling (torch.randint) not implemented.
    b, n, _ = src.shape
    src = src.astype(jnp.float32)
    dst = dst.astype(jnp.float32)
    if weights is None:
        weights = jnp.ones((b, n), jnp.float32)
    weights = weights.astype(jnp.float32)

    # One stacked (5, B, N) slab in a single materialization (XLA fuses the component
    # slices into the stack) -> lane-dense kernel input, no per-component HBM round trips.
    stacked = jnp.stack(
        [src[..., 0], src[..., 1], dst[..., 0], dst[..., 1], weights], axis=0)

    packed = _pallas_estimate(stacked)

    (sxx, sxy, syy, s_x, s_y, s_1,
     sxdx, sydx, s_dx, sxdy, sydy, s_dy, sdd,
     cs_x, cs_y, nf_s, cd_x, cd_y, nf_d) = (packed[:, k] for k in range(19))

    # Reconstruct the structured 7x7 Gram G = (W·A)^T (W·A).
    z = jnp.zeros_like(sxx)
    g = jnp.stack([
        jnp.stack([sxx, sxy, s_x, z, z, z, sxdx], axis=-1),
        jnp.stack([sxy, syy, s_y, z, z, z, sydx], axis=-1),
        jnp.stack([s_x, s_y, s_1, z, z, z, s_dx], axis=-1),
        jnp.stack([z, z, z, sxx, sxy, s_x, sxdy], axis=-1),
        jnp.stack([z, z, z, sxy, syy, s_y, sydy], axis=-1),
        jnp.stack([z, z, z, s_x, s_y, s_1, s_dy], axis=-1),
        jnp.stack([sxdx, sydx, s_dx, sxdy, sydy, s_dy, sdd], axis=-1),
    ], axis=-2)                                           # (B, 7, 7)

    def build_norm_matrix(cx, cy, nf):
        zz = jnp.zeros_like(nf)
        oo = jnp.ones_like(nf)
        return jnp.stack([
            jnp.stack([nf, zz, -nf * cx], axis=-1),
            jnp.stack([zz, nf, -nf * cy], axis=-1),
            jnp.stack([zz, zz, oo], axis=-1),
        ], axis=-2)                                       # (B, 3, 3)

    src_matrix = build_norm_matrix(cs_x, cs_y, nf_s)[:, None]
    dst_matrix = build_norm_matrix(cd_x, cd_y, nf_d)[:, None]

    # Smallest-eigenvalue eigenvector of G == last right singular vector of W·A.
    # TODO(synk): torch.linalg.svd / cpu_computation try-except fallback have no Pallas
    # equivalent; the tiny eigen-solve is done in plain JAX (f32 Gram squares the
    # condition number vs. an SVD of W·A for near-degenerate point sets).
    _, evecs = jnp.linalg.eigh(g)
    v = evecs[..., :, 0]                                  # (B, 7)

    h = -v[:, :-1] / v[:, -1:]                            # (B, 6)
    h = h.reshape(b, 2, 3)
    third_row = jnp.concatenate(
        [jnp.zeros((b, 1, 2), jnp.float32), jnp.ones((b, 1, 1), jnp.float32)],
        axis=-1)
    h = jnp.concatenate([h, third_row], axis=-2)[:, None]  # (B, 1, 3, 3)
    h = jnp.linalg.solve(dst_matrix, h) @ src_matrix
    transformation = h / h[..., -1:, -1:]
    return transformation


if __name__ == "__main__":
    key = jax.random.PRNGKey(0)
    b, n = 2, 8
    src = jax.random.uniform(key, (b, n, 2), jnp.float32, minval=0.0, maxval=10.0)

    # ground-truth per-batch affine maps (deterministic)
    a_true = jnp.array([[[1.2, -0.3, 5.0],
                         [0.4,  0.9, -2.0]],
                        [[0.8,  0.2, -1.5],
                         [-0.1, 1.1,  3.0]]], jnp.float32)   # (B, 2, 3)
    dst = jnp.einsum('bij,bnj->bni', a_true[:, :, :2], src) + a_true[:, None, :, 2]
    weights = jnp.ones((b, n), jnp.float32)

    t = affine_transform_2d(src, dst, weights)
    t = jax.block_until_ready(t)

    assert t.shape == (b, 1, 3, 3)
    assert bool(jnp.isfinite(t).all())

    # sanity: the estimated transform should map src onto dst
    src_h = jnp.concatenate([src, jnp.ones((b, n, 1), jnp.float32)], axis=-1)
    mapped = jnp.einsum('bij,bnj->bni', t[:, 0], src_h)
    mapped = mapped[..., :2] / mapped[..., 2:]
    assert bool(jnp.allclose(mapped, dst, atol=1e-2)), "affine estimate mismatch"

    print("KERNEL_OK")
</pallas_src>

<mosaic_0001>
module attributes {stable_mosaic.version = 11 : i64} {
  func.func @_estimate_kernel(%arg0: i32, %arg1: memref<5x8x8xf32, #tpu.memory_space<vmem>>, %arg2: memref<8x32xf32, #tpu.memory_space<vmem>>) attributes {dimension_semantics = [#tpu.dimension_semantics<parallel>], iteration_bounds = array<i64: 1>, scalar_prefetch = 0 : i64, scratch_operands = 0 : i64, tpu.core_type = #tpu.core_type<tc>, window_params = [{transform_indices = @transform_0, window_bounds = array<i64: 5, 8, 8>}, {transform_indices = @transform_1, window_bounds = array<i64: 8, 32>}]} {
    %c0 = arith.constant 0 : index
    %c0_0 = arith.constant 0 : index
    %c0_1 = arith.constant 0 : index
    %0 = vector.load %arg1[%c0, %c0_0, %c0_1] : memref<5x8x8xf32, #tpu.memory_space<vmem>>, vector<1x8x8xf32>
    %1 = vector.shape_cast %0 : vector<1x8x8xf32> to vector<8x8xf32>
    %c1 = arith.constant 1 : index
    %c0_2 = arith.constant 0 : index
    %c0_3 = arith.constant 0 : index
    %2 = vector.load %arg1[%c1, %c0_2, %c0_3] : memref<5x8x8xf32, #tpu.memory_space<vmem>>, vector<1x8x8xf32>
    %3 = vector.shape_cast %2 : vector<1x8x8xf32> to vector<8x8xf32>
    %c2 = arith.constant 2 : index
    %c0_4 = arith.constant 0 : index
    %c0_5 = arith.constant 0 : index
    %4 = vector.load %arg1[%c2, %c0_4, %c0_5] : memref<5x8x8xf32, #tpu.memory_space<vmem>>, vector<1x8x8xf32>
    %5 = vector.shape_cast %4 : vector<1x8x8xf32> to vector<8x8xf32>
    %c3 = arith.constant 3 : index
    %c0_6 = arith.constant 0 : index
    %c0_7 = arith.constant 0 : index
    %6 = vector.load %arg1[%c3, %c0_6, %c0_7] : memref<5x8x8xf32, #tpu.memory_space<vmem>>, vector<1x8x8xf32>
    %7 = vector.shape_cast %6 : vector<1x8x8xf32> to vector<8x8xf32>
    %c4 = arith.constant 4 : index
    %c0_8 = arith.constant 0 : index
    %c0_9 = arith.constant 0 : index
    %8 = vector.load %arg1[%c4, %c0_8, %c0_9] : memref<5x8x8xf32, #tpu.memory_space<vmem>>, vector<1x8x8xf32>
    %9 = vector.shape_cast %8 : vector<1x8x8xf32> to vector<8x8xf32>
    %cst = arith.constant dense<0.000000e+00> : vector<8xf32>
    %10 = vector.multi_reduction <add>, %1, %cst [1] : vector<8x8xf32> to vector<8xf32>
    %11 = vector.shape_cast %10 : vector<8xf32> to vector<8x1xf32>
    %cst_10 = arith.constant 1.250000e-01 : f32
    %12 = vector.broadcast %cst_10 : f32 to vector<8x1xf32>
    %13 = arith.mulf %11, %12 : vector<8x1xf32>
    %cst_11 = arith.constant dense<0.000000e+00> : vector<8xf32>
    %14 = vector.multi_reduction <add>, %3, %cst_11 [1] : vector<8x8xf32> to vector<8xf32>
    %15 = vector.shape_cast %14 : vector<8xf32> to vector<8x1xf32>
    %cst_12 = arith.constant 1.250000e-01 : f32
    %16 = vector.broadcast %cst_12 : f32 to vector<8x1xf32>
    %17 = arith.mulf %15, %16 : vector<8x1xf32>
    %cst_13 = arith.constant dense<0.000000e+00> : vector<8xf32>
    %18 = vector.multi_reduction <add>, %5, %cst_13 [1] : vector<8x8xf32> to vector<8xf32>
    %19 = vector.shape_cast %18 : vector<8xf32> to vector<8x1xf32>
    %cst_14 = arith.constant 1.250000e-01 : f32
    %20 = vector.broadcast %cst_14 : f32 to vector<8x1xf32>
    %21 = arith.mulf %19, %20 : vector<8x1xf32>
    %cst_15 = arith.constant dense<0.000000e+00> : vector<8xf32>
    %22 = vector.multi_reduction <add>, %7, %cst_15 [1] : vector<8x8xf32> to vector<8xf32>
    %23 = vector.shape_cast %22 : vector<8xf32> to vector<8x1xf32>
    %cst_16 = arith.constant 1.250000e-01 : f32
    %24 = vector.broadcast %cst_16 : f32 to vector<8x1xf32>
    %25 = arith.mulf %23, %24 : vector<8x1xf32>
    %26 = vector.broadcast %13 : vector<8x1xf32> to vector<8x8xf32>
    %27 = arith.subf %1, %26 : vector<8x8xf32>
    %28 = vector.broadcast %17 : vector<8x1xf32> to vector<8x8xf32>
    %29 = arith.subf %3, %28 : vector<8x8xf32>
    %30 = vector.broadcast %21 : vector<8x1xf32> to vector<8x8xf32>
    %31 = arith.subf %5, %30 : vector<8x8xf32>
    %32 = vector.broadcast %25 : vector<8x1xf32> to vector<8x8xf32>
    %33 = arith.subf %7, %32 : vector<8x8xf32>
    %34 = arith.mulf %27, %27 : vector<8x8xf32>
    %35 = arith.mulf %29, %29 : vector<8x8xf32>
    %36 = arith.addf %34, %35 : vector<8x8xf32>
    %cst_17 = arith.constant dense<0.000000e+00> : vector<8xf32>
    %37 = vector.multi_reduction <add>, %36, %cst_17 [1] : vector<8x8xf32> to vector<8xf32>
    %38 = vector.shape_cast %37 : vector<8xf32> to vector<8x1xf32>
    %cst_18 = arith.constant 1.250000e-01 : f32
    %39 = vector.broadcast %cst_18 : f32 to vector<8x1xf32>
    %40 = arith.mulf %38, %39 : vector<8x1xf32>
    %41 = arith.mulf %31, %31 : vector<8x8xf32>
    %42 = arith.mulf %33, %33 : vector<8x8xf32>
    %43 = arith.addf %41, %42 : vector<8x8xf32>
    %cst_19 = arith.constant dense<0.000000e+00> : vector<8xf32>
    %44 = vector.multi_reduction <add>, %43, %cst_19 [1] : vector<8x8xf32> to vector<8xf32>
    %45 = vector.shape_cast %44 : vector<8xf32> to vector<8x1xf32>
    %cst_20 = arith.constant 1.250000e-01 : f32
    %46 = vector.broadcast %cst_20 : f32 to vector<8x1xf32>
    %47 = arith.mulf %45, %46 : vector<8x1xf32>
    %cst_21 = arith.constant 0.000000e+00 : f32
    %48 = vector.broadcast %cst_21 : f32 to vector<8x1xf32>
    %49 = arith.cmpf oeq, %40, %48 : vector<8x1xf32>
    %50 = math.rsqrt %40 : vector<8x1xf32>
    %cst_22 = arith.constant 1.41421354 : f32
    %51 = vector.broadcast %cst_22 : f32 to vector<8x1xf32>
    %52 = arith.mulf %51, %50 : vector<8x1xf32>
    %cst_23 = arith.constant 0x7FC00000 : f32
    %53 = vector.broadcast %cst_23 : f32 to vector<8x1xf32>
    %54 = arith.select %49, %53, %52 : vector<8x1xi1>, vector<8x1xf32>
    %cst_24 = arith.constant 0.000000e+00 : f32
    %55 = vector.broadcast %cst_24 : f32 to vector<8x1xf32>
    %56 = arith.cmpf oeq, %47, %55 : vector<8x1xf32>
    %57 = math.rsqrt %47 : vector<8x1xf32>
    %cst_25 = arith.constant 1.41421354 : f32
    %58 = vector.broadcast %cst_25 : f32 to vector<8x1xf32>
    %59 = arith.mulf %58, %57 : vector<8x1xf32>
    %cst_26 = arith.constant 0x7FC00000 : f32
    %60 = vector.broadcast %cst_26 : f32 to vector<8x1xf32>
    %61 = arith.select %56, %60, %59 : vector<8x1xi1>, vector<8x1xf32>
    %cst_27 = arith.constant dense<0xFF800000> : vector<8xf32>
    %62 = vector.multi_reduction <maximumf>, %9, %cst_27 [1] : vector<8x8xf32> to vector<8xf32>
    %63 = vector.shape_cast %62 : vector<8xf32> to vector<8x1xf32>
    %64 = tpu.reciprocal %63 {approx = true} : vector<8x1xf32> -> vector<8x1xf32>
    %65 = vector.broadcast %64 : vector<8x1xf32> to vector<8x8xf32>
    %66 = arith.mulf %9, %65 : vector<8x8xf32>
    %67 = arith.mulf %66, %27 : vector<8x8xf32>
    %68 = arith.mulf %66, %29 : vector<8x8xf32>
    %69 = arith.mulf %66, %31 : vector<8x8xf32>
    %70 = arith.mulf %66, %33 : vector<8x8xf32>
    %71 = arith.mulf %67, %27 : vector<8x8xf32>
    %cst_28 = arith.constant dense<0.000000e+00> : vector<8xf32>
    %72 = vector.multi_reduction <add>, %71, %cst_28 [1] : vector<8x8xf32> to vector<8xf32>
    %73 = vector.shape_cast %72 : vector<8xf32> to vector<8x1xf32>
    %74 = arith.mulf %67, %29 : vector<8x8xf32>
    %cst_29 = arith.constant dense<0.000000e+00> : vector<8xf32>
    %75 = vector.multi_reduction <add>, %74, %cst_29 [1] : vector<8x8xf32> to vector<8xf32>
    %76 = vector.shape_cast %75 : vector<8xf32> to vector<8x1xf32>
    %77 = arith.mulf %68, %29 : vector<8x8xf32>
    %cst_30 = arith.constant dense<0.000000e+00> : vector<8xf32>
    %78 = vector.multi_reduction <add>, %77, %cst_30 [1] : vector<8x8xf32> to vector<8xf32>
    %79 = vector.shape_cast %78 : vector<8xf32> to vector<8x1xf32>
    %cst_31 = arith.constant dense<0.000000e+00> : vector<8xf32>
    %80 = vector.multi_reduction <add>, %67, %cst_31 [1] : vector<8x8xf32> to vector<8xf32>
    %81 = vector.shape_cast %80 : vector<8xf32> to vector<8x1xf32>
    %cst_32 = arith.constant dense<0.000000e+00> : vector<8xf32>
    %82 = vector.multi_reduction <add>, %68, %cst_32 [1] : vector<8x8xf32> to vector<8xf32>
    %83 = vector.shape_cast %82 : vector<8xf32> to vector<8x1xf32>
    %cst_33 = arith.constant dense<0.000000e+00> : vector<8xf32>
    %84 = vector.multi_reduction <add>, %66, %cst_33 [1] : vector<8x8xf32> to vector<8xf32>
    %85 = vector.shape_cast %84 : vector<8xf32> to vector<8x1xf32>
    %86 = arith.mulf %67, %31 : vector<8x8xf32>
    %cst_34 = arith.constant dense<0.000000e+00> : vector<8xf32>
    %87 = vector.multi_reduction <add>, %86, %cst_34 [1] : vector<8x8xf32> to vector<8xf32>
    %88 = vector.shape_cast %87 : vector<8xf32> to vector<8x1xf32>
    %89 = arith.mulf %68, %31 : vector<8x8xf32>
    %cst_35 = arith.constant dense<0.000000e+00> : vector<8xf32>
    %90 = vector.multi_reduction <add>, %89, %cst_35 [1] : vector<8x8xf32> to vector<8xf32>
    %91 = vector.shape_cast %90 : vector<8xf32> to vector<8x1xf32>
    %cst_36 = arith.constant dense<0.000000e+00> : vector<8xf32>
    %92 = vector.multi_reduction <add>, %69, %cst_36 [1] : vector<8x8xf32> to vector<8xf32>
    %93 = vector.shape_cast %92 : vector<8xf32> to vector<8x1xf32>
    %94 = arith.mulf %67, %33 : vector<8x8xf32>
    %cst_37 = arith.constant dense<0.000000e+00> : vector<8xf32>
    %95 = vector.multi_reduction <add>, %94, %cst_37 [1] : vector<8x8xf32> to vector<8xf32>
    %96 = vector.shape_cast %95 : vector<8xf32> to vector<8x1xf32>
    %97 = arith.mulf %68, %33 : vector<8x8xf32>
    %cst_38 = arith.constant dense<0.000000e+00> : vector<8xf32>
    %98 = vector.multi_reduction <add>, %97, %cst_38 [1] : vector<8x8xf32> to vector<8xf32>
    %99 = vector.shape_cast %98 : vector<8xf32> to vector<8x1xf32>
    %cst_39 = arith.constant dense<0.000000e+00> : vector<8xf32>
    %100 = vector.multi_reduction <add>, %70, %cst_39 [1] : vector<8x8xf32> to vector<8xf32>
    %101 = vector.shape_cast %100 : vector<8xf32> to vector<8x1xf32>
    %102 = arith.mulf %69, %31 : vector<8x8xf32>
    %103 = arith.mulf %70, %33 : vector<8x8xf32>
    %104 = arith.addf %102, %103 : vector<8x8xf32>
    %cst_40 = arith.constant dense<0.000000e+00> : vector<8xf32>
    %105 = vector.multi_reduction <add>, %104, %cst_40 [1] : vector<8x8xf32> to vector<8xf32>
    %106 = vector.shape_cast %105 : vector<8xf32> to vector<8x1xf32>
    %107 = arith.mulf %54, %54 : vector<8x1xf32>
    %108 = arith.mulf %54, %61 : vector<8x1xf32>
    %109 = arith.mulf %61, %61 : vector<8x1xf32>
    %110 = arith.mulf %73, %107 : vector<8x1xf32>
    %111 = arith.mulf %76, %107 : vector<8x1xf32>
    %112 = arith.mulf %79, %107 : vector<8x1xf32>
    %113 = arith.mulf %81, %54 : vector<8x1xf32>
    %114 = arith.mulf %83, %54 : vector<8x1xf32>
    %115 = arith.mulf %88, %108 : vector<8x1xf32>
    %116 = arith.mulf %91, %108 : vector<8x1xf32>
    %117 = arith.mulf %96, %108 : vector<8x1xf32>
    %118 = arith.mulf %99, %108 : vector<8x1xf32>
    %119 = arith.mulf %93, %61 : vector<8x1xf32>
    %120 = arith.mulf %101, %61 : vector<8x1xf32>
    %121 = arith.mulf %106, %109 : vector<8x1xf32>
    %cst_41 = arith.constant 0.000000e+00 : f32
    %122 = vector.broadcast %cst_41 : f32 to vector<8x13xf32>
    %123 = tpu.concatenate %110, %111, %112, %113, %114, %85, %115, %116, %119, %117, %118, %120, %121, %13, %17, %54 in 1 : vector<8x1xf32>, vector<8x1xf32>, vector<8x1xf32>, vector<8x1xf32>, vector<8x1xf32>, vector<8x1xf32>, vector<8x1xf32>, vector<8x1xf32>, vector<8x1xf32>, vector<8x1xf32>, vector<8x1xf32>, vector<8x1xf32>, vector<8x1xf32>, vector<8x1xf32>, vector<8x1xf32>, vector<8x1xf32> -> vector<8x16xf32>
    %124 = tpu.concatenate %21, %25, %61, %122 in 1 : vector<8x1xf32>, vector<8x1xf32>, vector<8x1xf32>, vector<8x13xf32> -> vector<8x16xf32>
    %125 = tpu.concatenate %123, %124 in 1 : vector<8x16xf32>, vector<8x16xf32> -> vector<8x32xf32>
    %c0_42 = arith.constant 0 : index
    %c0_43 = arith.constant 0 : index
    %126 = vector.load %arg2[%c0_42, %c0_43] : memref<8x32xf32, #tpu.memory_space<vmem>>, vector<8x32xf32>
    tpu.vector_store %arg2[%c0_42, %c0_43], %125 {strides = array<i32>} : memref<8x32xf32, #tpu.memory_space<vmem>>, vector<8x32xf32>,
    return
  }
  func.func @transform_0(%arg0: i32) -> (i32, i32, i32) {
    %c0_i32 = arith.constant 0 : i32
    %c0_i32_0 = arith.constant 0 : i32
    %c0_i32_1 = arith.constant 0 : i32
    return %c0_i32, %arg0, %c0_i32_0 : i32, i32, i32
  }
  func.func @transform_1(%arg0: i32) -> (i32, i32) {
    %c0_i32 = arith.constant 0 : i32
    %c0_i32_0 = arith.constant 0 : i32
    return %arg0, %c0_i32 : i32, i32
  }
}

</mosaic_0001>

<llo_original>
// kernel: tpu_custom_call.1
$region0: #{tpu_custom_call.1}
  #allocation0 [shape = 'u32[]', space=smem, size = 0x4, offset = 0x4, fixed_abs, tag = 'smem constant byte address 0x4 - core index']
  #allocation1 [shape = 'u32[144,128]{1,0:T(1,128)}', space=vmem, size = 0x12000, scoped, tag = 'internal scratch']
  %s0 = inlined_call_operand.hbm [shape: f32[5,8,8], index: 0, kind: input, shape index: {}]
  %s1 = inlined_call_operand.hbm [shape: f32[8,32], index: 1, kind: output, shape index: {}]
  %s2 = sld [smem:[#allocation0]]
  $region18: #{tpu_custom_call.1} parent=0
    _
  %s4 = ssub.s32 1, %s2
  %s5 = scalar_select 0, %s4, %s2
  $region1: #{tpu_custom_call.1} parent=0
    #allocation2 [shape = 'u8[20480]{0}', space=vmem, size = 0x5000, scoped, tag = 'input window, operand 0, single buffered']
    #allocation3 [shape = 's32[1]{0}', space=sflag, size = 0x4, scoped, tag = 'scoped memory for tpu_custom_call.1']
    #allocation4 [shape = 's32[1]{0}', space=sflag, size = 0x4, scoped, tag = 'scoped memory for tpu_custom_call.1']
    #allocation5 [shape = 'u8[4096]{0}', space=vmem, size = 0x1000, scoped, tag = 'output window, operand 0, single buffered']
    %6 = vsyncpa [#allocation3], 0
    %7 = vsyncpa [#allocation4], 0
    // Predicated region
    $region2: #{tpu_custom_call.1} parent=1 // pred_check
      _
    $region3: #{tpu_custom_call.1} parent=1 // pred_check_branch
      %9 = sbr.rel (0) target = $region5
    $region4: #{tpu_custom_call.1} parent=1 // pred_region
      %s11 = ssub.s32 640, 640
      %12 = vsyncadd [#allocation3], %s11
      %s13 = sshll.u32 [#allocation2], 4
      %s14 = int_to_ptr.vmem [resolvable:$true] %s13
      %19 = dma.hbm_to_vmem [thread:$0]  %s0, 640, %s14, [#allocation3], 128, 128, 8
    $region5: #{tpu_custom_call.1} parent=1 // pred_fallthru
      _
    // Predicated region
    $region6: #{tpu_custom_call.1} parent=1 // pred_check
      _
    $region7: #{tpu_custom_call.1} parent=1 // pred_check_branch
      %21 = sbr.rel (0) target = $region9
    $region8: #{tpu_custom_call.1} parent=1 // pred_region
      %22 = dma.done [#allocation3], 640
    $region9: #{tpu_custom_call.1} parent=1 // pred_fallthru
      _
    %v23 = vld [vmem:[#allocation2] sm:$0xff]
    %s24 = scalar_lea.vmem [#allocation2], 8
    %v25 = vld [vmem:[%s24] sm:$0xff]
    %s26 = scalar_lea.vmem [#allocation2], 16
    %v27 = vld [vmem:[%s26] sm:$0xff]
    %s28 = scalar_lea.vmem [#allocation2], 24
    %v29 = vld [vmem:[%s28] sm:$0xff]
    %s30 = scalar_lea.vmem [#allocation2], 32
    %v31 = vld [vmem:[%s30] sm:$0xff]
    %vm32 = vcmask 64512
    %v33 = vsel %vm32, %v23, 0.0
    %34 = vadd.xlane.f32.xlu0 %v33
    %v35 = vpop.xlane.xlu0 %34
    %v36 = vmul.f32 %v35, 0.125
    %v37 = vsel %vm32, %v25, 0.0
    %38 = vadd.xlane.f32.xlu0 %v37
    %v39 = vpop.xlane.xlu0 %38
    %v40 = vmul.f32 %v39, 0.125
    %v41 = vsel %vm32, %v27, 0.0
    %42 = vadd.xlane.f32.xlu0 %v41
    %v43 = vpop.xlane.xlu0 %42
    %v44 = vmul.f32 %v43, 0.125
    %v45 = vsel %vm32, %v29, 0.0
    %46 = vadd.xlane.f32.xlu0 %v45
    %v47 = vpop.xlane.xlu0 %46
    %v48 = vmul.f32 %v47, 0.125
    %v49 = vsub.f32 %v23, %v36
    %v50 = vsub.f32 %v25, %v40
    %v51 = vsub.f32 %v27, %v44
    %v52 = vsub.f32 %v29, %v48
    %v53 = vmul.f32 %v49, %v49
    %v54 = vmul.f32 %v50, %v50
    %v55 = vadd.f32 %v53, %v54
    %v56 = vsel %vm32, %v55, 0.0
    %57 = vadd.xlane.f32.xlu0 %v56
    %v58 = vpop.xlane.xlu0 %57
    %v59 = vmul.f32 %v58, 0.125
    %v60 = vmul.f32 %v51, %v51
    %v61 = vmul.f32 %v52, %v52
    %v62 = vadd.f32 %v60, %v61
    %v63 = vsel %vm32, %v62, 0.0
    %64 = vadd.xlane.f32.xlu0 %v63
    %v65 = vpop.xlane.xlu0 %64
    %v66 = vmul.f32 %v65, 0.125
    %vm67 = vcmp.eq.f32.partialorder %v59, 0.0
    %v68 = vrsqrt.pop %v59
    %v69 = vmul.f32 %v68, 1.4142135
    %v70 = vsel %vm67, nan, %v69
    %vm71 = vcmp.eq.f32.partialorder %v66, 0.0
    %v72 = vrsqrt.pop %v66
    %v73 = vmul.f32 %v72, 1.4142135
    %v74 = vsel %vm71, nan, %v73
    %v75 = vsel %vm32, %v31, -inf
    %76 = vmax.xlane.f32.xlu0 %v75
    %v77 = vpop.xlane.xlu0 %76
    %v78 = vrcp.pop %v77
    %v79 = vmul.f32 %v31, %v78
    %v80 = vmul.f32 %v79, %v49
    %v81 = vmul.f32 %v79, %v50
    %v82 = vmul.f32 %v79, %v51
    %v83 = vmul.f32 %v79, %v52
    %v84 = vmul.f32 %v80, %v49
    %v85 = vsel %vm32, %v84, 0.0
    %86 = vadd.xlane.f32.xlu0 %v85
    %v87 = vpop.xlane.xlu0 %86
    %v88 = vmul.f32 %v80, %v50
    %v89 = vsel %vm32, %v88, 0.0
    %90 = vadd.xlane.f32.xlu0 %v89
    %v91 = vpop.xlane.xlu0 %90
    %v92 = vmul.f32 %v81, %v50
    %v93 = vsel %vm32, %v92, 0.0
    %94 = vadd.xlane.f32.xlu0 %v93
    %v95 = vpop.xlane.xlu0 %94
    %v96 = vsel %vm32, %v80, 0.0
    %97 = vadd.xlane.f32.xlu0 %v96
    %v98 = vpop.xlane.xlu0 %97
    %v99 = vsel %vm32, %v81, 0.0
    %100 = vadd.xlane.f32.xlu0 %v99
    %v101 = vpop.xlane.xlu0 %100
    %v102 = vsel %vm32, %v79, 0.0
    %103 = vadd.xlane.f32.xlu0 %v102
    %v104 = vpop.xlane.xlu0 %103
    %v105 = vmul.f32 %v80, %v51
    %v106 = vsel %vm32, %v105, 0.0
    %107 = vadd.xlane.f32.xlu0 %v106
    %v108 = vpop.xlane.xlu0 %107
    %v109 = vmul.f32 %v81, %v51
    %v110 = vsel %vm32, %v109, 0.0
    %111 = vadd.xlane.f32.xlu0 %v110
    %v112 = vpop.xlane.xlu0 %111
    %v113 = vsel %vm32, %v82, 0.0
    %114 = vadd.xlane.f32.xlu0 %v113
    %v115 = vpop.xlane.xlu0 %114
    %v116 = vmul.f32 %v80, %v52
    %v117 = vsel %vm32, %v116, 0.0
    %118 = vadd.xlane.f32.xlu0 %v117
    %v119 = vpop.xlane.xlu0 %118
    %v120 = vmul.f32 %v81, %v52
    %v121 = vsel %vm32, %v120, 0.0
    %122 = vadd.xlane.f32.xlu0 %v121
    %v123 = vpop.xlane.xlu0 %122
    %v124 = vsel %vm32, %v83, 0.0
    %125 = vadd.xlane.f32.xlu0 %v124
    %v126 = vpop.xlane.xlu0 %125
    %v127 = vmul.f32 %v82, %v51
    %v128 = vmul.f32 %v83, %v52
    %v129 = vadd.f32 %v127, %v128
    %v130 = vsel %vm32, %v129, 0.0
    %131 = vadd.xlane.f32.xlu0 %v130
    %v132 = vpop.xlane.xlu0 %131
    %v133 = vmul.f32 %v70, %v70
    %v134 = vmul.f32 %v70, %v74
    %v135 = vmul.f32 %v74, %v74
    %v136 = vmul.f32 %v87, %v133
    %v137 = vmul.f32 %v91, %v133
    %v138 = vmul.f32 %v95, %v133
    %v139 = vmul.f32 %v98, %v70
    %v140 = vmul.f32 %v101, %v70
    %v141 = vmul.f32 %v108, %v134
    %v142 = vmul.f32 %v112, %v134
    %v143 = vmul.f32 %v119, %v134
    %v144 = vmul.f32 %v123, %v134
    %v145 = vmul.f32 %v115, %v74
    %v146 = vmul.f32 %v126, %v74
    %v147 = vmul.f32 %v132, %v135
    %vm148 = vcmask 7168
    %v149 = vsel %vm148, %v136, %v137
    %vm150 = vcmask 15360
    %v151 = vsel %vm150, %v149, %v138
    %vm152 = vcmask 23552
    %v153 = vsel %vm152, %v151, %v139
    %vm154 = vcmask 31744
    %v155 = vsel %vm154, %v153, %v140
    %vm156 = vcmask 39936
    %v157 = vsel %vm156, %v155, %v104
    %vm158 = vcmask 48128
    %v159 = vsel %vm158, %v157, %v141
    %vm160 = vcmask 56320
    %v161 = vsel %vm160, %v159, %v142
    %v162 = vsel %vm32, %v161, %v145
    %vm163 = vcmask 72704
    %v164 = vsel %vm163, %v162, %v143
    %vm165 = vcmask 80896
    %v166 = vsel %vm165, %v164, %v144
    %vm167 = vcmask 89088
    %v168 = vsel %vm167, %v166, %v146
    %vm169 = vcmask 97280
    %v170 = vsel %vm169, %v168, %v147
    %vm171 = vcmask 105472
    %v172 = vsel %vm171, %v170, %v36
    %vm173 = vcmask 113664
    %v174 = vsel %vm173, %v172, %v40
    %vm175 = vcmask 121856
    %v176 = vsel %vm175, %v174, %v70
    %v177 = vsel %vm148, %v44, %v48
    %v178 = vsel %vm150, %v177, %v74
    %v179 = vsel %vm152, %v178, 0.0
    %181 = vrot.lane.b32.xlu0 %v179, 16
    %v182 = vpop.permute.xlu0 %181
    %vm184 = vcmask 130048
    %v185 = vsel %vm184, %v176, %v182
    %vm186 = vcmask 261120
    %187 = vst.msk [vmem:[#allocation5] sm:$0xff] %vm186, %v185
    // Predicated region
    $region10: #{tpu_custom_call.1} parent=1 // pred_check
      _
    $region11: #{tpu_custom_call.1} parent=1 // pred_check_branch
      %189 = sbr.rel (0) target = $region13
    $region12: #{tpu_custom_call.1} parent=1 // pred_region
      %s191 = ssub.s32 128, 128
      %192 = vsyncadd [#allocation4], %s191
      %s194 = sshll.u32 [#allocation5], 4
      %s195 = int_to_ptr.vmem [resolvable:$true] %s194
      %197 = dma.vmem_to_hbm [thread:$0]  %s195, 128, %s1, [#allocation4]
    $region13: #{tpu_custom_call.1} parent=1 // pred_fallthru
      _
    // Predicated region
    $region14: #{tpu_custom_call.1} parent=1 // pred_check
      _
    $region15: #{tpu_custom_call.1} parent=1 // pred_check_branch
      %199 = sbr.rel (0) target = $region17
    $region16: #{tpu_custom_call.1} parent=1 // pred_region
      %200 = dma.done [#allocation4], 128
    $region17: #{tpu_custom_call.1} parent=1 // pred_fallthru
      _
    %201 = vsyncpa [#allocation3], 1
    %202 = vsyncpa [#allocation4], 1

</llo_original>
